<compile_context>
chip_gen: v6e
topology: v6e:2x2x1
jax: 0.10.0
libtpu: 0.0.40
codegen_flags: <defaults>
</compile_context>

<pallas_src>
import math

import jax
import jax.numpy as jnp
from jax.experimental import pallas as pl
from jax.experimental.pallas import tpu as pltpu

# ---------------------------------------------------------------------------
# Model constants (mirroring the PyTorch module: F = glove.dim + D = 200)
# ---------------------------------------------------------------------------
D = 100
GLOVE_DIM = 100
F_IN = GLOVE_DIM + D          # 200  (logical feature width)
F_PAD = 256                   # lane-aligned feature width used for the GEMMs


def _round_up(n, m):
    return ((n + m - 1) // m) * m


# ---------------------------------------------------------------------------
# Kernel: one row-tile of the highway layer
#   xp = [x | 0]                              (200 -> 256 zero-pad, in VMEM)
#   z  = xp @ [W1 | Wg] + [b1 | bg]           (single fused MXU pass over x)
#   t  = relu(relu(z[:, :256]) @ W2 + b2)
#   p  = sigmoid(z[:, 256:456])
#   o  = x + p * (t - x)                      (== p*t + (1-p)*x)
# ---------------------------------------------------------------------------
def highway_kernel(x_ref, w1g_ref, b1g_ref, w2_ref, b2_ref, o_ref, xpad_ref):
    blk, fin = x_ref.shape                      # (tm, 200)
    fpad = xpad_ref.shape[1]                    # 256

    x = x_ref[...]                              # (tm, 200) streamed dtype (bf16)

    # Zero-pad the GEMM operand to 256 lanes in VMEM.  Done every step (the
    # scratch is per-core; with "parallel" semantics a pid==0 init would only
    # run on one core).  Both stores are cheap lane-masked VPU stores.
    xpad_ref[:, fin:] = jnp.zeros((blk, fpad - fin), xpad_ref.dtype)
    xpad_ref[:, :fin] = x.astype(xpad_ref.dtype)
    xp = xpad_ref[...]                          # (tm, 256) bf16, pad lanes == 0

    # Fused transform-1 + gate GEMM: x streams through the MXU once.
    z = jnp.dot(xp, w1g_ref[...],
                preferred_element_type=jnp.float32) + b1g_ref[...]   # (tm, 512) f32

    # Transform branch: ReLU -> Linear2 -> ReLU (bf16 operands, f32 accumulate).
    t = jnp.maximum(z[:, :fpad], 0.0)
    t = jnp.dot(t.astype(jnp.bfloat16), w2_ref[...],
                preferred_element_type=jnp.float32) + b2_ref[...]
    t = jnp.maximum(t, 0.0)                     # (tm, 256); pad cols are 0

    # Gate branch: sigmoid on the valid 200 columns (exp + approx reciprocal
    # both run on the EUP slot; slice start 256 is 128-aligned).
    zg = z[:, fpad:fpad + fin]                  # (tm, 200)
    p = pl.reciprocal(1.0 + jnp.exp(-zg), approx=True)

    # Residual blend in the original (unpadded) feature width, f32.
    xf = x.astype(jnp.float32)
    o_ref[...] = (xf + p * (t[:, :fin] - xf)).astype(o_ref.dtype)


# ---------------------------------------------------------------------------
# Wrapper: builds the grid over rows; no HBM-side padding or slicing.
# ---------------------------------------------------------------------------
def highway_pallas(x, packed, *, tm=2048, out_dtype=jnp.float32):
    """x: (..., F_IN), any float dtype (bf16 recommended for HBM bandwidth).

    packed: (w1g, b1g, w2, b2) from pack_params (feature dims padded to 256,
    W1/Wg fused along the output dim, weights bf16, biases f32).
    """
    w1g, b1g, w2, b2 = packed
    fp = w1g.shape[0]                               # padded feature width (256)
    f = x.shape[-1]                                 # logical feature width (200)
    lead = x.shape[:-1]
    m = math.prod(lead) if lead else 1

    xf = x.reshape(m, f)                            # streamed at caller dtype

    # Row tile: multiple of 8; cap so the grid keeps >= 2 blocks (megacore /
    # v7x second TensorCore), never larger than the (8-rounded) row count.
    tm_cap = _round_up(m, 8)
    if m > 8:
        tm_cap = min(tm_cap, _round_up(pl.cdiv(m, 2), 8))
    tm = max(8, min(tm, tm_cap))
    nblk = pl.cdiv(m, tm)                           # last block may be partial

    in_bytes = jnp.dtype(xf.dtype).itemsize
    out_bytes = jnp.dtype(out_dtype).itemsize
    cost = pl.CostEstimate(
        flops=int(2 * m * fp * 3 * fp),             # x@(256,512) + t@(256,256)
        transcendentals=int(m * f),                 # exp for the sigmoid
        bytes_accessed=int(m * f * (in_bytes + out_bytes)
                           + 2 * (w1g.size + w2.size)          # bf16 weights
                           + 4 * (b1g.size + b2.size)))        # f32 biases

    out = pl.pallas_call(
        highway_kernel,
        out_shape=jax.ShapeDtypeStruct((m, f), out_dtype),
        grid=(nblk,),
        in_specs=[
            pl.BlockSpec((tm, f), lambda i: (i, 0)),         # x: streamed, unpadded
            pl.BlockSpec((fp, 2 * fp), lambda i: (0, 0)),    # fused W1|Wg: resident
            pl.BlockSpec((1, 2 * fp), lambda i: (0, 0)),     # fused b1|bg
            pl.BlockSpec((fp, fp), lambda i: (0, 0)),        # W2
            pl.BlockSpec((1, fp), lambda i: (0, 0)),         # b2
        ],
        out_specs=pl.BlockSpec((tm, f), lambda i: (i, 0)),   # o: unpadded
        scratch_shapes=[pltpu.VMEM((tm, fp), jnp.bfloat16)], # in-VMEM 200->256 pad
        compiler_params=pltpu.CompilerParams(
            dimension_semantics=("parallel",),
            vmem_limit_bytes=48 * 1024 * 1024),
        cost_estimate=cost,
    )(xf, w1g, b1g, w2, b2)

    return out.reshape(*lead, f)


# ---------------------------------------------------------------------------
# Parameters: synthetic init + offline padding / fusion of weights
# (weights stored pre-transposed as (in, out); a PyTorch nn.Linear weight of
#  shape (out, in) would be transposed before packing)
# ---------------------------------------------------------------------------
def init_params(key, scale=0.05):
    ks = jax.random.split(key, 6)
    f = F_IN

    def nrm(k, shape):
        return jax.random.normal(k, shape, jnp.float32) * scale

    return dict(
        w1=nrm(ks[0], (f, f)), b1=nrm(ks[1], (f,)),   # transform linear 1
        w2=nrm(ks[2], (f, f)), b2=nrm(ks[3], (f,)),   # transform linear 2
        wg=nrm(ks[4], (f, f)), bg=nrm(ks[5], (f,)),   # gate linear
    )


def pack_params(p, fp=F_PAD):
    f = p["w1"].shape[0]

    def padw(w):   # zero-pad both dims (zero rows/cols are inert through the GEMMs)
        return jnp.pad(w, ((0, fp - f), (0, fp - f)))

    def padb(b):
        return jnp.pad(b, (0, fp - f))

    # Fuse the two x-consuming GEMMs: z = xp @ [W1 | Wg]  (concat boundary at 256).
    w1g = jnp.concatenate([padw(p["w1"]), padw(p["wg"])], axis=1).astype(jnp.bfloat16)
    b1g = jnp.concatenate([padb(p["b1"]), padb(p["bg"])])[None, :].astype(jnp.float32)
    w2 = padw(p["w2"]).astype(jnp.bfloat16)
    b2 = padb(p["b2"])[None, :].astype(jnp.float32)
    return w1g, b1g, w2, b2


# ---------------------------------------------------------------------------
# Pure-JAX reference (same bf16-operand / f32-accumulate GEMM convention)
# ---------------------------------------------------------------------------
def highway_ref(x, p):
    def mm(a, w):
        return jnp.dot(a.astype(jnp.bfloat16), w.astype(jnp.bfloat16),
                       preferred_element_type=jnp.float32)

    t = jnp.maximum(mm(x, p["w1"]) + p["b1"], 0.0)
    t = jnp.maximum(mm(t, p["w2"]) + p["b2"], 0.0)
    g = jax.nn.sigmoid(mm(x, p["wg"]) + p["bg"])
    return g * t + (1.0 - g) * x


# ---------------------------------------------------------------------------
if __name__ == "__main__":
    key = jax.random.PRNGKey(0)
    kx, kp = jax.random.split(key)

    B, T = 2, 60                                    # small test shape; F = 200
    x = jax.random.normal(kx, (B, T, F_IN), jnp.float32)

    params = init_params(kp)
    packed = pack_params(params)

    fwd = jax.jit(lambda xx: highway_pallas(xx, packed))

    # Stream activations in bf16 (cast done outside the jit so the kernel's
    # HBM input traffic is genuinely 2 B/elem); output stays f32 like the
    # PyTorch module.  B*T = 120 rows -> tm capped to 64, 2 grid blocks, and
    # the partial-last-block (56 valid rows) path is exercised.
    out = fwd(x.astype(jnp.bfloat16))
    jax.block_until_ready(out)

    ref = highway_ref(x, params)
    assert out.shape == x.shape
    assert out.dtype == jnp.float32
    assert bool(jnp.all(jnp.isfinite(out)))
    max_err = float(jnp.max(jnp.abs(out - ref)))
    assert max_err < 5e-2, f"max abs err {max_err}"
    print("KERNEL_OK")
</pallas_src>

<mosaic_0001>
module attributes {stable_mosaic.version = 11 : i64} {
  func.func @highway_kernel(%arg0: i32, %arg1: memref<64x200xbf16, #tpu.memory_space<vmem>>, %arg2: memref<256x512xbf16, #tpu.memory_space<vmem>>, %arg3: memref<1x512xf32, #tpu.memory_space<vmem>>, %arg4: memref<256x256xbf16, #tpu.memory_space<vmem>>, %arg5: memref<1x256xf32, #tpu.memory_space<vmem>>, %arg6: memref<64x200xf32, #tpu.memory_space<vmem>>, %arg7: memref<64x256xbf16, #tpu.memory_space<vmem>>) attributes {dimension_semantics = [#tpu.dimension_semantics<parallel>], iteration_bounds = array<i64: 2>, scalar_prefetch = 0 : i64, scratch_operands = 1 : i64, tpu.core_type = #tpu.core_type<tc>, window_params = [{transform_indices = @transform_0, window_bounds = array<i64: 64, 200>}, {pipeline_mode = #tpu.pipeline_mode<synchronous>, transform_indices = @transform_1, window_bounds = array<i64: 256, 512>}, {pipeline_mode = #tpu.pipeline_mode<synchronous>, transform_indices = @transform_2, window_bounds = array<i64: 1, 512>}, {pipeline_mode = #tpu.pipeline_mode<synchronous>, transform_indices = @transform_3, window_bounds = array<i64: 256, 256>}, {pipeline_mode = #tpu.pipeline_mode<synchronous>, transform_indices = @transform_4, window_bounds = array<i64: 1, 256>}, {transform_indices = @transform_5, window_bounds = array<i64: 64, 200>}]} {
    %c0 = arith.constant 0 : index
    %c0_0 = arith.constant 0 : index
    %0 = vector.load %arg1[%c0, %c0_0] : memref<64x200xbf16, #tpu.memory_space<vmem>>, vector<64x200xbf16>
    %cst = arith.constant 0.000000e+00 : bf16
    %1 = vector.broadcast %cst : bf16 to vector<64x56xbf16>
    %c0_1 = arith.constant 0 : index
    %c200 = arith.constant 200 : index
    %2 = vector.load %arg7[%c0_1, %c200] : memref<64x256xbf16, #tpu.memory_space<vmem>>, vector<64x56xbf16>
    tpu.vector_store %arg7[%c0_1, %c200], %1 {strides = array<i32>} : memref<64x256xbf16, #tpu.memory_space<vmem>>, vector<64x56xbf16>,
    %c0_2 = arith.constant 0 : index
    %c0_3 = arith.constant 0 : index
    %3 = vector.load %arg7[%c0_2, %c0_3] : memref<64x256xbf16, #tpu.memory_space<vmem>>, vector<64x200xbf16>
    tpu.vector_store %arg7[%c0_2, %c0_3], %0 {strides = array<i32>} : memref<64x256xbf16, #tpu.memory_space<vmem>>, vector<64x200xbf16>,
    %c0_4 = arith.constant 0 : index
    %c0_5 = arith.constant 0 : index
    %4 = vector.load %arg7[%c0_4, %c0_5] : memref<64x256xbf16, #tpu.memory_space<vmem>>, vector<64x256xbf16>
    %c0_6 = arith.constant 0 : index
    %c0_7 = arith.constant 0 : index
    %5 = vector.load %arg2[%c0_6, %c0_7] : memref<256x512xbf16, #tpu.memory_space<vmem>>, vector<256x512xbf16>
    %cst_8 = arith.constant dense<0.000000e+00> : vector<64x512xf32>
    %6 = tpu.matmul %4, %5, %cst_8 {dimension_numbers = #tpu.dot_dimension_numbers<[1], [0], [0], [1], [0, 0, 1, 1], [], []>} : vector<64x256xbf16>, vector<256x512xbf16>, vector<64x512xf32> -> vector<64x512xf32>
    %c0_9 = arith.constant 0 : index
    %c0_10 = arith.constant 0 : index
    %7 = vector.load %arg3[%c0_9, %c0_10] : memref<1x512xf32, #tpu.memory_space<vmem>>, vector<1x512xf32>
    %8 = vector.broadcast %7 : vector<1x512xf32> to vector<64x512xf32>
    %9 = arith.addf %6, %8 : vector<64x512xf32>
    %10 = vector.extract_strided_slice %9 {offsets = [0, 0], sizes = [64, 256], strides = [1, 1]} : vector<64x512xf32> to vector<64x256xf32>
    %cst_11 = arith.constant 0.000000e+00 : f32
    %11 = vector.broadcast %cst_11 : f32 to vector<64x256xf32>
    %12 = arith.maximumf %10, %11 : vector<64x256xf32>
    %13 = arith.truncf %12 : vector<64x256xf32> to vector<64x256xbf16>
    %c0_12 = arith.constant 0 : index
    %c0_13 = arith.constant 0 : index
    %14 = vector.load %arg4[%c0_12, %c0_13] : memref<256x256xbf16, #tpu.memory_space<vmem>>, vector<256x256xbf16>
    %cst_14 = arith.constant dense<0.000000e+00> : vector<64x256xf32>
    %15 = tpu.matmul %13, %14, %cst_14 {dimension_numbers = #tpu.dot_dimension_numbers<[1], [0], [0], [1], [0, 0, 1, 1], [], []>} : vector<64x256xbf16>, vector<256x256xbf16>, vector<64x256xf32> -> vector<64x256xf32>
    %c0_15 = arith.constant 0 : index
    %c0_16 = arith.constant 0 : index
    %16 = vector.load %arg5[%c0_15, %c0_16] : memref<1x256xf32, #tpu.memory_space<vmem>>, vector<1x256xf32>
    %17 = vector.broadcast %16 : vector<1x256xf32> to vector<64x256xf32>
    %18 = arith.addf %15, %17 : vector<64x256xf32>
    %cst_17 = arith.constant 0.000000e+00 : f32
    %19 = vector.broadcast %cst_17 : f32 to vector<64x256xf32>
    %20 = arith.maximumf %18, %19 : vector<64x256xf32>
    %21 = vector.extract_strided_slice %9 {offsets = [0, 256], sizes = [64, 200], strides = [1, 1]} : vector<64x512xf32> to vector<64x200xf32>
    %cst_18 = arith.constant 0.000000e+00 : f32
    %22 = vector.broadcast %cst_18 : f32 to vector<64x200xf32>
    %23 = arith.subf %22, %21 : vector<64x200xf32>
    %24 = math.exp %23 : vector<64x200xf32>
    %cst_19 = arith.constant 1.000000e+00 : f32
    %25 = vector.broadcast %cst_19 : f32 to vector<64x200xf32>
    %26 = arith.addf %25, %24 : vector<64x200xf32>
    %27 = tpu.reciprocal %26 {approx = true} : vector<64x200xf32> -> vector<64x200xf32>
    %28 = arith.extf %0 : vector<64x200xbf16> to vector<64x200xf32>
    %29 = vector.extract_strided_slice %20 {offsets = [0, 0], sizes = [64, 200], strides = [1, 1]} : vector<64x256xf32> to vector<64x200xf32>
    %30 = arith.subf %29, %28 : vector<64x200xf32>
    %31 = arith.mulf %27, %30 : vector<64x200xf32>
    %32 = arith.addf %28, %31 : vector<64x200xf32>
    %c0_20 = arith.constant 0 : index
    %c0_21 = arith.constant 0 : index
    %33 = vector.load %arg6[%c0_20, %c0_21] : memref<64x200xf32, #tpu.memory_space<vmem>>, vector<64x200xf32>
    tpu.vector_store %arg6[%c0_20, %c0_21], %32 {strides = array<i32>} : memref<64x200xf32, #tpu.memory_space<vmem>>, vector<64x200xf32>,
    return
  }
  func.func @transform_0(%arg0: i32) -> (i32, i32) {
    %c0_i32 = arith.constant 0 : i32
    %c0_i32_0 = arith.constant 0 : i32
    return %arg0, %c0_i32 : i32, i32
  }
  func.func @transform_1(%arg0: i32) -> (i32, i32) {
    %c0_i32 = arith.constant 0 : i32
    %c0_i32_0 = arith.constant 0 : i32
    %c0_i32_1 = arith.constant 0 : i32
    return %c0_i32, %c0_i32_0 : i32, i32
  }
  func.func @transform_2(%arg0: i32) -> (i32, i32) {
    %c0_i32 = arith.constant 0 : i32
    %c0_i32_0 = arith.constant 0 : i32
    %c0_i32_1 = arith.constant 0 : i32
    return %c0_i32, %c0_i32_0 : i32, i32
  }
  func.func @transform_3(%arg0: i32) -> (i32, i32) {
    %c0_i32 = arith.constant 0 : i32
    %c0_i32_0 = arith.constant 0 : i32
    %c0_i32_1 = arith.constant 0 : i32
    return %c0_i32, %c0_i32_0 : i32, i32
  }
  func.func @transform_4(%arg0: i32) -> (i32, i32) {
    %c0_i32 = arith.constant 0 : i32
    %c0_i32_0 = arith.constant 0 : i32
    %c0_i32_1 = arith.constant 0 : i32
    return %c0_i32, %c0_i32_0 : i32, i32
  }
  func.func @transform_5(%arg0: i32) -> (i32, i32) {
    %c0_i32 = arith.constant 0 : i32
    %c0_i32_0 = arith.constant 0 : i32
    return %arg0, %c0_i32 : i32, i32
  }
}

</mosaic_0001>

<llo_original>
// kernel: _lambda_.1
$region0: #{_lambda_.1}
  #allocation0 [shape = 'u32[]', space=smem, size = 0x4, offset = 0x4, fixed_abs, tag = 'smem constant byte address 0x4 - core index']
  #allocation1 [shape = 'u32[144,128]{1,0:T(1,128)}', space=vmem, size = 0x12000, scoped, tag = 'internal scratch']
  #allocation2 [shape = 'bf16[64,256]{1,0:T(8,128)(2,1)}', space=vmem, size = 0x8000, scoped, tag = 'scratch operand']
  %s0 = inlined_call_operand.vmem [shape: bf16[120,200], index: 0, kind: input, shape index: {}]
  %s1 = inlined_call_operand.hbm [shape: bf16[256,512], index: 1, kind: input, shape index: {}]
  %s2 = inlined_call_operand.vmem [shape: f32[1,512], index: 2, kind: input, shape index: {}]
  %s3 = inlined_call_operand.vmem [shape: bf16[256,256], index: 3, kind: input, shape index: {}]
  %s4 = inlined_call_operand.vmem [shape: f32[1,256], index: 4, kind: input, shape index: {}]
  %s5 = inlined_call_operand.vmem [shape: f32[120,200], index: 5, kind: output, shape index: {}]
  %s6 = sld [smem:[#allocation0]]
  $region83: #{_lambda_.1} parent=0
    _
  %s8 = ssub.s32 1, %s6
  %s9 = scalar_select 0, %s8, %s6
  $region1: #{_lambda_.1} parent=0
    #allocation3 [shape = 'u8[262144]{0}', space=vmem, size = 0x40000, scoped, tag = 'input window, operand 1, single buffered']
    #allocation4 [shape = 's32[2]{0}', space=sflag, size = 0x8, scoped, tag = 'scoped memory for _lambda_.1']
    #allocation5 [shape = 'u8[131072]{0}', space=vmem, size = 0x20000, scoped, tag = 'output window, operand 0']
    %10 = vsyncpa [#allocation4], 0
    loop: start=0, step=1, limit=4
    $region2: #{_lambda_.1} parent=1 // loop_pre_header
      _
    $region3: #{_lambda_.1} parent=1 // loop_header
      %s12 = sphi 0, %s16
      %p13 = scmp.ge.s32.totalorder %s12, 4
      %s22 = sphi 0, %s24
      %s25 = sphi 0, %s22
      %s26 = sphi 0, %s25
      %s42 = sphi 0, %s26
      %s46 = sphi 0, %s46
      %s48 = sphi 0, %s46
      %s49 = sphi 0, %s48
      %s63 = sphi 0, %s49
      %s67 = sphi 0, %s67
      %s69 = sphi 0, %s67
      %s70 = sphi 0, %s69
      %s84 = sphi 0, %s70
      %s88 = sphi 0, %s88
      %s90 = sphi 0, %s88
      %s91 = sphi 0, %s90
      %s105 = sphi 0, %s91
      %s109 = sphi 0, %s109
      %s111 = sphi 0, %s109
      %s112 = sphi 0, %s111
      %s126 = sphi 0, %s112
      %s132 = sphi 0, %s134
      %s135 = sphi 0, %s132
      %s136 = sphi 0, %s135
      %s152 = sphi 0, %s136
    $region4: #{_lambda_.1} parent=1 // loop_header_branch
      %15 = sbr.rel (%p13) target = $region8
    $region5: #{_lambda_.1} parent=1 // loop_body
      %s17 = ssub.s32 %s12, 1
      %s18 = ssub.s32 %s12, 2
      %s19 = sadd.s32 %s12, 1
      %s20 = ssub.s32 %s12, %s19
      %p21 = scmp.eq.s32.totalorder %s20, 0
      %s23 = sadd.s32 %s22, 1
      %s24 = scalar_select %p21, %s22, %s23
      %p27 = pneg %p21
      %p28 = scmp.eq.s32.totalorder %s12, 1
      %p29 = por %p27, %p28
      %p30 = scmp.ne.s32.totalorder %s22, %s25
      %p31 = scmp.eq.s32.totalorder %s12, 0
      %p32 = por %p30, %p31
      %p33 = scmp.ne.s32.totalorder %s22, %s25
      %p34 = scmp.eq.s32.totalorder %s17, 1
      %p35 = por %p33, %p34
      %p36 = scmp.ne.s32.totalorder %s25, %s26
      %p37 = scmp.eq.s32.totalorder %s17, 0
      %p38 = por %p36, %p37
      %p39 = scmp.ne.s32.totalorder %s25, %s26
      %p40 = scmp.eq.s32.totalorder %s18, 1
      %p41 = por %p39, %p40
      %p43 = scmp.ne.s32.totalorder %s26, %s42
      %p44 = scmp.eq.s32.totalorder %s18, 0
      %p45 = por %p43, %p44
      %s47 = sadd.s32 %s46, 1
      %p50 = scmp.eq.s32.totalorder %s12, 1
      %p51 = scmp.ne.s32.totalorder %s46, %s48
      %p52 = scmp.eq.s32.totalorder %s12, 0
      %p53 = por %p51, %p52
      %p54 = scmp.ne.s32.totalorder %s46, %s48
      %p55 = scmp.eq.s32.totalorder %s17, 1
      %p56 = por %p54, %p55
      %p57 = scmp.ne.s32.totalorder %s48, %s49
      %p58 = scmp.eq.s32.totalorder %s17, 0
      %p59 = por %p57, %p58
      %p60 = scmp.ne.s32.totalorder %s48, %s49
      %p61 = scmp.eq.s32.totalorder %s18, 1
      %p62 = por %p60, %p61
      %p64 = scmp.ne.s32.totalorder %s49, %s63
      %p65 = scmp.eq.s32.totalorder %s18, 0
      %p66 = por %p64, %p65
      %s68 = sadd.s32 %s67, 1
      %p71 = scmp.eq.s32.totalorder %s12, 1
      %p72 = scmp.ne.s32.totalorder %s67, %s69
      %p73 = scmp.eq.s32.totalorder %s12, 0
      %p74 = por %p72, %p73
      %p75 = scmp.ne.s32.totalorder %s67, %s69
      %p76 = scmp.eq.s32.totalorder %s17, 1
      %p77 = por %p75, %p76
      %p78 = scmp.ne.s32.totalorder %s69, %s70
      %p79 = scmp.eq.s32.totalorder %s17, 0
      %p80 = por %p78, %p79
      %p81 = scmp.ne.s32.totalorder %s69, %s70
      %p82 = scmp.eq.s32.totalorder %s18, 1
      %p83 = por %p81, %p82
      %p85 = scmp.ne.s32.totalorder %s70, %s84
      %p86 = scmp.eq.s32.totalorder %s18, 0
      %p87 = por %p85, %p86
      %s89 = sadd.s32 %s88, 1
      %p92 = scmp.eq.s32.totalorder %s12, 1
      %p93 = scmp.ne.s32.totalorder %s88, %s90
      %p94 = scmp.eq.s32.totalorder %s12, 0
      %p95 = por %p93, %p94
      %p96 = scmp.ne.s32.totalorder %s88, %s90
      %p97 = scmp.eq.s32.totalorder %s17, 1
      %p98 = por %p96, %p97
      %p99 = scmp.ne.s32.totalorder %s90, %s91
      %p100 = scmp.eq.s32.totalorder %s17, 0
      %p101 = por %p99, %p100
      %p102 = scmp.ne.s32.totalorder %s90, %s91
      %p103 = scmp.eq.s32.totalorder %s18, 1
      %p104 = por %p102, %p103
      %p106 = scmp.ne.s32.totalorder %s91, %s105
      %p107 = scmp.eq.s32.totalorder %s18, 0
      %p108 = por %p106, %p107
      %s110 = sadd.s32 %s109, 1
      %p113 = scmp.eq.s32.totalorder %s12, 1
      %p114 = scmp.ne.s32.totalorder %s109, %s111
      %p115 = scmp.eq.s32.totalorder %s12, 0
      %p116 = por %p114, %p115
      %p117 = scmp.ne.s32.totalorder %s109, %s111
      %p118 = scmp.eq.s32.totalorder %s17, 1
      %p119 = por %p117, %p118
      %p120 = scmp.ne.s32.totalorder %s111, %s112
      %p121 = scmp.eq.s32.totalorder %s17, 0
      %p122 = por %p120, %p121
      %p123 = scmp.ne.s32.totalorder %s111, %s112
      %p124 = scmp.eq.s32.totalorder %s18, 1
      %p125 = por %p123, %p124
      %p127 = scmp.ne.s32.totalorder %s112, %s126
      %p128 = scmp.eq.s32.totalorder %s18, 0
      %p129 = por %p127, %p128
      %s130 = ssub.s32 %s12, %s19
      %p131 = scmp.eq.s32.totalorder %s130, 0
      %s133 = sadd.s32 %s132, 1
      %s134 = scalar_select %p131, %s132, %s133
      %p137 = pneg %p131
      %p138 = scmp.eq.s32.totalorder %s12, 1
      %p139 = por %p137, %p138
      %p140 = scmp.ne.s32.totalorder %s132, %s135
      %p141 = scmp.eq.s32.totalorder %s12, 0
      %p142 = por %p140, %p141
      %p143 = scmp.ne.s32.totalorder %s132, %s135
      %p144 = scmp.eq.s32.totalorder %s17, 1
      %p145 = por %p143, %p144
      %p146 = scmp.ne.s32.totalorder %s135, %s136
      %p147 = scmp.eq.s32.totalorder %s17, 0
      %p148 = por %p146, %p147
      %p149 = scmp.ne.s32.totalorder %s135, %s136
      %p150 = scmp.eq.s32.totalorder %s18, 1
      %p151 = por %p149, %p150
      %p153 = scmp.ne.s32.totalorder %s136, %s152
      %p154 = scmp.eq.s32.totalorder %s18, 0
      %p155 = por %p153, %p154
      %p156 = scmp.le.s32.totalorder 1, %s12
      %p157 = scmp.lt.s32.totalorder %s12, 3
      %p158 = pnand %p156, %p157
      %p159 = pneg %p158
      // Predicated region
      $region9: #{_lambda_.1} parent=5 // pred_check
        _
      $region10: #{_lambda_.1} parent=5 // pred_check_branch
        %161 = sbr.rel (%p158) target = $region12
      $region11: #{_lambda_.1} parent=5 // pred_region
        %s162 = ssub.s32 %s12, 1
        // Predicated region
        $region13: #{_lambda_.1} parent=11 // pred_check
          %p163 = pneg %p59
        $region14: #{_lambda_.1} parent=11 // pred_check_branch
          %165 = sbr.rel (%p163) target = $region16
        $region15: #{_lambda_.1} parent=11 // pred_region
          %s167 = ssub.s32 8192, 8192
          %168 = vsyncadd [#allocation4], %s167
          %s169 = sshll.u32 [#allocation3], 4
          %s170 = int_to_ptr.vmem [resolvable:$true] %s169
          %175 = dma.hbm_to_vmem [thread:$0]  %s1, 8192, %s170, [#allocation4], 256, 256, 16
        $region16: #{_lambda_.1} parent=11 // pred_fallthru
          _
        // Predicated region
        $region17: #{_lambda_.1} parent=11 // pred_check
          %p176 = pneg %p80
        $region18: #{_lambda_.1} parent=11 // pred_check_branch
          %178 = sbr.rel (%p176) target = $region20
        $region19: #{_lambda_.1} parent=11 // pred_region
          _
        $region20: #{_lambda_.1} parent=11 // pred_fallthru
          _
        // Predicated region
        $region21: #{_lambda_.1} parent=11 // pred_check
          %p179 = pneg %p101
        $region22: #{_lambda_.1} parent=11 // pred_check_branch
          %181 = sbr.rel (%p179) target = $region24
        $region23: #{_lambda_.1} parent=11 // pred_region
          _
        $region24: #{_lambda_.1} parent=11 // pred_fallthru
          _
        // Predicated region
        $region25: #{_lambda_.1} parent=11 // pred_check
          %p182 = pneg %p122
        $region26: #{_lambda_.1} parent=11 // pred_check_branch
          %184 = sbr.rel (%p182) target = $region28
        $region27: #{_lambda_.1} parent=11 // pred_region
          _
        $region28: #{_lambda_.1} parent=11 // pred_fallthru
          _
      $region12: #{_lambda_.1} parent=5 // pred_fallthru
        _
      %p185 = scmp.lt.s32.totalorder %s12, 2
      // Predicated region
      $region29: #{_lambda_.1} parent=5 // pred_check
        %p186 = pneg %p185
      $region30: #{_lambda_.1} parent=5 // pred_check_branch
        %188 = sbr.rel (%p186) target = $region32
      $region31: #{_lambda_.1} parent=5 // pred_region
        // Predicated region
        $region33: #{_lambda_.1} parent=31 // pred_check
          %p189 = pneg %p32
        $region34: #{_lambda_.1} parent=31 // pred_check_branch
          %191 = sbr.rel (%p189) target = $region36
        $region35: #{_lambda_.1} parent=31 // pred_region
          %s192 = smul.u32 8, %s12
          %s193 = ssub.s32 15, %s192
          %p194 = scmp.lt.s32.totalorder %s193, 8
          %s195 = scalar_select %p194, %s193, 8
          %s196 = smul.u32 64, %s195
          %s197 = smul.u32 %s196, 2
          %p198 = scmp.lt.s32.totalorder %s192, 14
          %s199 = scalar_select %p198, %s192, 14
          %s200 = smul.addr %s199, 2
          %s201 = smul.addr %s200, 4
          %s202 = scalar_lea.vmem %s0, %s201
          %s203 = smul.u32 8, %s12
          %s204 = ssub.s32 15, %s203
          %p205 = scmp.lt.s32.totalorder %s204, 8
          %s206 = scalar_select %p205, %s204, 8
          %s207 = smul.u32 64, %s206
          %s208 = smul.u32 %s207, 2
        $region36: #{_lambda_.1} parent=31 // pred_fallthru
          _
      $region32: #{_lambda_.1} parent=5 // pred_fallthru
        _
      %p209 = scmp.le.s32.totalorder 1, %s12
      %p210 = scmp.lt.s32.totalorder %s12, 3
      %p211 = pnand %p209, %p210
      %p212 = pneg %p211
      // Predicated region
      $region37: #{_lambda_.1} parent=5 // pred_check
        _
      $region38: #{_lambda_.1} parent=5 // pred_check_branch
        %214 = sbr.rel (%p211) target = $region40
      $region39: #{_lambda_.1} parent=5 // pred_region
        %s215 = ssub.s32 %s12, 1
        // Predicated region
        $region41: #{_lambda_.1} parent=39 // pred_check
          %p216 = pneg %p59
        $region42: #{_lambda_.1} parent=39 // pred_check_branch
          %218 = sbr.rel (%p216) target = $region44
        $region43: #{_lambda_.1} parent=39 // pred_region
          %219 = dma.done [#allocation4], 8192
        $region44: #{_lambda_.1} parent=39 // pred_fallthru
          _
        %s220 = smul.u32 8, %s17
        %s221 = ssub.s32 15, %s220
        %p222 = scmp.lt.s32.totalorder %s221, 8
        %s223 = scalar_select %p222, %s221, 8
        %s224 = smul.u32 64, %s223
        %s225 = smul.u32 %s224, 2
        %p226 = scmp.lt.s32.totalorder %s220, 14
        %s227 = scalar_select %p226, %s220, 14
        %s228 = smul.addr %s227, 2
        %s229 = smul.addr %s228, 4
        %s230 = scalar_lea.vmem %s0, %s229
        %p231 = pneg %p38
        %p232 = pneg %p35
        %p233 = pneg %p59
        %p234 = pneg %p56
        %p235 = pneg %p80
        %p236 = pneg %p77
        %p237 = pneg %p101
        %p238 = pneg %p98
        %p239 = pneg %p122
        %p240 = pneg %p119
        %p241 = pneg %p148
        %p242 = pneg %p145
        %s243 = sand.u32 %s135, 1
        %s244 = sand.u32 %s135, 1
        %s245 = smul.addr %s244, 128
        %s246 = scalar_lea.vmem [#allocation5], %s245
        %s247 = smul.u32 8, %s17
        %s248 = ssub.s32 15, %s247
        %p249 = scmp.lt.s32.totalorder %s248, 8
        %s250 = scalar_select %p249, %s248, 8
        %s251 = smul.u32 64, %s250
        %s252 = smul.u32 %s251, 2
        %p253 = scmp.lt.s32.totalorder %s247, 14
        %s254 = scalar_select %p253, %s247, 14
        %s255 = smul.addr %s254, 2
        %s256 = smul.addr %s255, 4
        %s257 = scalar_lea.vmem %s0, %s256
        %s258 = smul.u32 8, %s17
        %s259 = ssub.s32 15, %s258
        %p260 = scmp.lt.s32.totalorder %s259, 8
        %s261 = scalar_select %p260, %s259, 8
        %s262 = smul.u32 64, %s261
        %s263 = smul.u32 %s262, 2
        %s264 = smul.u32 8, %s17
        %s265 = ssub.s32 15, %s264
        %p266 = scmp.lt.s32.totalorder %s265, 8
        %s267 = scalar_select %p266, %s265, 8
        %s268 = smul.u32 128, %s267
        %s269 = smul.u32 %s268, 2
        %v271 = vld [vmem:[%s257] sm:$0xff]
        %v272 = vld [vmem:[%s257 + $0x8] sm:$0xff]
        %v273 = vld [vmem:[%s257 + $0x10] sm:$0xff]
        %v274 = vld [vmem:[%s257 + $0x18] sm:$0xff]
        %v275 = vld [vmem:[%s257 + $0x20] sm:$0xff]
        %v276 = vld [vmem:[%s257 + $0x28] sm:$0xff]
        %v277 = vld [vmem:[%s257 + $0x30] sm:$0xff]
        %v278 = vld [vmem:[%s257 + $0x38] sm:$0xff]
        %vm279 = vcmask 1044032
        %280 = vst.msk [vmem:[#allocation2 + $0x4] sm:$0xf] %vm279, 0
        %281 = vst.msk [vmem:[#allocation2 + $0xc] sm:$0xf] %vm279, 0
        %282 = vst.msk [vmem:[#allocation2 + $0x14] sm:$0xf] %vm279, 0
        %283 = vst.msk [vmem:[#allocation2 + $0x1c] sm:$0xf] %vm279, 0
        %284 = vst.msk [vmem:[#allocation2 + $0x24] sm:$0xf] %vm279, 0
        %285 = vst.msk [vmem:[#allocation2 + $0x2c] sm:$0xf] %vm279, 0
        %286 = vst.msk [vmem:[#allocation2 + $0x34] sm:$0xf] %vm279, 0
        %287 = vst.msk [vmem:[#allocation2 + $0x3c] sm:$0xf] %vm279, 0
        %vm288 = vcmask 1043456
        %vm289 = vcmask 588804
        %vm290 = vmor %vm289, %vm288
        %291 = vst.msk [vmem:[#allocation2] sm:$0xff] %vm290, %v271
        %292 = vst.msk [vmem:[#allocation2 + $0x8] sm:$0xff] %vm290, %v272
        %293 = vst.msk [vmem:[#allocation2 + $0x10] sm:$0xff] %vm290, %v273
        %294 = vst.msk [vmem:[#allocation2 + $0x18] sm:$0xff] %vm290, %v274
        %295 = vst.msk [vmem:[#allocation2 + $0x20] sm:$0xff] %vm290, %v275
        %296 = vst.msk [vmem:[#allocation2 + $0x28] sm:$0xff] %vm290, %v276
        %297 = vst.msk [vmem:[#allocation2 + $0x30] sm:$0xff] %vm290, %v277
        %298 = vst.msk [vmem:[#allocation2 + $0x38] sm:$0xff] %vm290, %v278
        %v299 = vld [vmem:[#allocation2] sm:$0xff]
        %v300 = vld [vmem:[#allocation2 + $0x8] sm:$0xff]
        %v301 = vld [vmem:[#allocation2 + $0x10] sm:$0xff]
        %v302 = vld [vmem:[#allocation2 + $0x18] sm:$0xff]
        %v303 = vld [vmem:[#allocation2 + $0x20] sm:$0xff]
        %v304 = vld [vmem:[#allocation2 + $0x28] sm:$0xff]
        %v305 = vld [vmem:[#allocation2 + $0x30] sm:$0xff]
        %v306 = vld [vmem:[#allocation2 + $0x38] sm:$0xff]
        %v307 = vld [vmem:[#allocation3] sm:$0xff]
        %v308 = vld [vmem:[#allocation3 + $0x8] sm:$0xff]
        %v309 = vld [vmem:[#allocation3 + $0x10] sm:$0xff]
        %v310 = vld [vmem:[#allocation3 + $0x18] sm:$0xff]
        %v311 = vld [vmem:[#allocation3 + $0x20] sm:$0xff]
        %v312 = vld [vmem:[#allocation3 + $0x28] sm:$0xff]
        %v313 = vld [vmem:[#allocation3 + $0x30] sm:$0xff]
        %v314 = vld [vmem:[#allocation3 + $0x38] sm:$0xff]
        %v315 = vld [vmem:[#allocation3 + $0x40] sm:$0xff]
        %v316 = vld [vmem:[#allocation3 + $0x48] sm:$0xff]
        %v317 = vld [vmem:[#allocation3 + $0x50] sm:$0xff]
        %v318 = vld [vmem:[#allocation3 + $0x58] sm:$0xff]
        %v319 = vld [vmem:[#allocation3 + $0x60] sm:$0xff]
        %v320 = vld [vmem:[#allocation3 + $0x68] sm:$0xff]
        %v321 = vld [vmem:[#allocation3 + $0x70] sm:$0xff]
        %v322 = vld [vmem:[#allocation3 + $0x78] sm:$0xff]
        %v323 = vld [vmem:[#allocation3 + $0x80] sm:$0xff]
        %v324 = vld [vmem:[#allocation3 + $0x88] sm:$0xff]
        %v325 = vld [vmem:[#allocation3 + $0x90] sm:$0xff]
        %v326 = vld [vmem:[#allocation3 + $0x98] sm:$0xff]
        %v327 = vld [vmem:[#allocation3 + $0xa0] sm:$0xff]
        %v328 = vld [vmem:[#allocation3 + $0xa8] sm:$0xff]
        %v329 = vld [vmem:[#allocation3 + $0xb0] sm:$0xff]
        %v330 = vld [vmem:[#allocation3 + $0xb8] sm:$0xff]
        %v331 = vld [vmem:[#allocation3 + $0xc0] sm:$0xff]
        %v332 = vld [vmem:[#allocation3 + $0xc8] sm:$0xff]
        %v333 = vld [vmem:[#allocation3 + $0xd0] sm:$0xff]
        %v334 = vld [vmem:[#allocation3 + $0xd8] sm:$0xff]
        %v335 = vld [vmem:[#allocation3 + $0xe0] sm:$0xff]
        %v336 = vld [vmem:[#allocation3 + $0xe8] sm:$0xff]
        %v337 = vld [vmem:[#allocation3 + $0xf0] sm:$0xff]
        %v338 = vld [vmem:[#allocation3 + $0xf8] sm:$0xff]
        %v339 = vld [vmem:[#allocation3 + $0x100] sm:$0xff]
        %v340 = vld [vmem:[#allocation3 + $0x108] sm:$0xff]
        %v341 = vld [vmem:[#allocation3 + $0x110] sm:$0xff]
        %v342 = vld [vmem:[#allocation3 + $0x118] sm:$0xff]
        %v343 = vld [vmem:[#allocation3 + $0x120] sm:$0xff]
        %v344 = vld [vmem:[#allocation3 + $0x128] sm:$0xff]
        %v345 = vld [vmem:[#allocation3 + $0x130] sm:$0xff]
        %v346 = vld [vmem:[#allocation3 + $0x138] sm:$0xff]
        %v347 = vld [vmem:[#allocation3 + $0x140] sm:$0xff]
        %v348 = vld [vmem:[#allocation3 + $0x148] sm:$0xff]
        %v349 = vld [vmem:[#allocation3 + $0x150] sm:$0xff]
        %v350 = vld [vmem:[#allocation3 + $0x158] sm:$0xff]
        %v351 = vld [vmem:[#allocation3 + $0x160] sm:$0xff]
        %v352 = vld [vmem:[#allocation3 + $0x168] sm:$0xff]
        %v353 = vld [vmem:[#allocation3 + $0x170] sm:$0xff]
        %v354 = vld [vmem:[#allocation3 + $0x178] sm:$0xff]
        %v355 = vld [vmem:[#allocation3 + $0x180] sm:$0xff]
        %v356 = vld [vmem:[#allocation3 + $0x188] sm:$0xff]
        %v357 = vld [vmem:[#allocation3 + $0x190] sm:$0xff]
        %v358 = vld [vmem:[#allocation3 + $0x198] sm:$0xff]
        %v359 = vld [vmem:[#allocation3 + $0x1a0] sm:$0xff]
        %v360 = vld [vmem:[#allocation3 + $0x1a8] sm:$0xff]
        %v361 = vld [vmem:[#allocation3 + $0x1b0] sm:$0xff]
        %v362 = vld [vmem:[#allocation3 + $0x1b8] sm:$0xff]
        %v363 = vld [vmem:[#allocation3 + $0x1c0] sm:$0xff]
        %v364 = vld [vmem:[#allocation3 + $0x1c8] sm:$0xff]
        %v365 = vld [vmem:[#allocation3 + $0x1d0] sm:$0xff]
        %v366 = vld [vmem:[#allocation3 + $0x1d8] sm:$0xff]
        %v367 = vld [vmem:[#allocation3 + $0x1e0] sm:$0xff]
        %v368 = vld [vmem:[#allocation3 + $0x1e8] sm:$0xff]
        %v369 = vld [vmem:[#allocation3 + $0x1f0] sm:$0xff]
        %v370 = vld [vmem:[#allocation3 + $0x1f8] sm:$0xff]
        %v371 = vld [vmem:[%s2] sm:$0xf]
        %v373 = vlaneseq
        %v374 = vshrl.u32 %v373, 7
        %v375 = vsub.s32 0, %v374
        %v376 = vrot.slane %v371, %v375
        %v377 = vlaneseq
        %v378 = vshrl.u32 %v377, 7
        %v379 = vsub.s32 1, %v378
        %v380 = vrot.slane %v371, %v379
        %v381 = vlaneseq
        %v382 = vshrl.u32 %v381, 7
        %v383 = vsub.s32 2, %v382
        %v384 = vrot.slane %v371, %v383
        %v385 = vlaneseq
        %v386 = vshrl.u32 %v385, 7
        %v387 = vsub.s32 3, %v386
        %v388 = vrot.slane %v371, %v387
        %v401 = vunpack.c.l.b16 %v299
        %v402 = vunpack.c.h.b16 %v299
        %v403 = vunpack.c.l.b16 %v300
        %v404 = vunpack.c.h.b16 %v300
        %v405 = vunpack.c.l.b16 %v301
        %v406 = vunpack.c.h.b16 %v301
        %v407 = vunpack.c.l.b16 %v302
        %v408 = vunpack.c.h.b16 %v302
        %v409 = vunpack.c.l.b16 %v303
        %v410 = vunpack.c.h.b16 %v303
        %v411 = vunpack.c.l.b16 %v304
        %v412 = vunpack.c.h.b16 %v304
        %v413 = vunpack.c.l.b16 %v305
        %v414 = vunpack.c.h.b16 %v305
        %v415 = vunpack.c.l.b16 %v306
        %v416 = vunpack.c.h.b16 %v306
        %v417 = vpack.c.b16 %v403, %v401
        %v418 = vpack.c.b16 %v404, %v402
        %v419 = vpack.c.b16 %v407, %v405
        %v420 = vpack.c.b16 %v408, %v406
        %v421 = vpack.c.b16 %v411, %v409
        %v422 = vpack.c.b16 %v412, %v410
        %v423 = vpack.c.b16 %v415, %v413
        %v424 = vpack.c.b16 %v416, %v414
        %v497 = vunpack.c.l.b16 %v307
        %v498 = vunpack.c.h.b16 %v307
        %v499 = vunpack.c.l.b16 %v308
        %v500 = vunpack.c.h.b16 %v308
        %v501 = vunpack.c.l.b16 %v309
        %v502 = vunpack.c.h.b16 %v309
        %v503 = vunpack.c.l.b16 %v310
        %v504 = vunpack.c.h.b16 %v310
        %v505 = vunpack.c.l.b16 %v311
        %v506 = vunpack.c.h.b16 %v311
        %v507 = vunpack.c.l.b16 %v312
        %v508 = vunpack.c.h.b16 %v312
        %v509 = vunpack.c.l.b16 %v313
        %v510 = vunpack.c.h.b16 %v313
        %v511 = vunpack.c.l.b16 %v314
        %v512 = vunpack.c.h.b16 %v314
        %v513 = vunpack.c.l.b16 %v315
        %v514 = vunpack.c.h.b16 %v315
        %v515 = vunpack.c.l.b16 %v316
        %v516 = vunpack.c.h.b16 %v316
        %v517 = vunpack.c.l.b16 %v317
        %v518 = vunpack.c.h.b16 %v317
        %v519 = vunpack.c.l.b16 %v318
        %v520 = vunpack.c.h.b16 %v318
        %v521 = vunpack.c.l.b16 %v319
        %v522 = vunpack.c.h.b16 %v319
        %v523 = vunpack.c.l.b16 %v320
        %v524 = vunpack.c.h.b16 %v320
        %v525 = vunpack.c.l.b16 %v321
        %v526 = vunpack.c.h.b16 %v321
        %v527 = vunpack.c.l.b16 %v322
        %v528 = vunpack.c.h.b16 %v322
        %v529 = vunpack.c.l.b16 %v323
        %v530 = vunpack.c.h.b16 %v323
        %v531 = vunpack.c.l.b16 %v324
        %v532 = vunpack.c.h.b16 %v324
        %v533 = vunpack.c.l.b16 %v325
        %v534 = vunpack.c.h.b16 %v325
        %v535 = vunpack.c.l.b16 %v326
        %v536 = vunpack.c.h.b16 %v326
        %v537 = vunpack.c.l.b16 %v327
        %v538 = vunpack.c.h.b16 %v327
        %v539 = vunpack.c.l.b16 %v328
        %v540 = vunpack.c.h.b16 %v328
        %v541 = vunpack.c.l.b16 %v329
        %v542 = vunpack.c.h.b16 %v329
        %v543 = vunpack.c.l.b16 %v330
        %v544 = vunpack.c.h.b16 %v330
        %v545 = vunpack.c.l.b16 %v331
        %v546 = vunpack.c.h.b16 %v331
        %v547 = vunpack.c.l.b16 %v332
        %v548 = vunpack.c.h.b16 %v332
        %v549 = vunpack.c.l.b16 %v333
        %v550 = vunpack.c.h.b16 %v333
        %v551 = vunpack.c.l.b16 %v334
        %v552 = vunpack.c.h.b16 %v334
        %v553 = vunpack.c.l.b16 %v335
        %v554 = vunpack.c.h.b16 %v335
        %v555 = vunpack.c.l.b16 %v336
        %v556 = vunpack.c.h.b16 %v336
        %v557 = vunpack.c.l.b16 %v337
        %v558 = vunpack.c.h.b16 %v337
        %v559 = vunpack.c.l.b16 %v338
        %v560 = vunpack.c.h.b16 %v338
        %v561 = vunpack.c.l.b16 %v339
        %v562 = vunpack.c.h.b16 %v339
        %v563 = vunpack.c.l.b16 %v340
        %v564 = vunpack.c.h.b16 %v340
        %v565 = vunpack.c.l.b16 %v341
        %v566 = vunpack.c.h.b16 %v341
        %v567 = vunpack.c.l.b16 %v342
        %v568 = vunpack.c.h.b16 %v342
        %v569 = vunpack.c.l.b16 %v343
        %v570 = vunpack.c.h.b16 %v343
        %v571 = vunpack.c.l.b16 %v344
        %v572 = vunpack.c.h.b16 %v344
        %v573 = vunpack.c.l.b16 %v345
        %v574 = vunpack.c.h.b16 %v345
        %v575 = vunpack.c.l.b16 %v346
        %v576 = vunpack.c.h.b16 %v346
        %v577 = vunpack.c.l.b16 %v347
        %v578 = vunpack.c.h.b16 %v347
        %v579 = vunpack.c.l.b16 %v348
        %v580 = vunpack.c.h.b16 %v348
        %v581 = vunpack.c.l.b16 %v349
        %v582 = vunpack.c.h.b16 %v349
        %v583 = vunpack.c.l.b16 %v350
        %v584 = vunpack.c.h.b16 %v350
        %v585 = vunpack.c.l.b16 %v351
        %v586 = vunpack.c.h.b16 %v351
        %v587 = vunpack.c.l.b16 %v352
        %v588 = vunpack.c.h.b16 %v352
        %v589 = vunpack.c.l.b16 %v353
        %v590 = vunpack.c.h.b16 %v353
        %v591 = vunpack.c.l.b16 %v354
        %v592 = vunpack.c.h.b16 %v354
        %v593 = vunpack.c.l.b16 %v355
        %v594 = vunpack.c.h.b16 %v355
        %v595 = vunpack.c.l.b16 %v356
        %v596 = vunpack.c.h.b16 %v356
        %v597 = vunpack.c.l.b16 %v357
        %v598 = vunpack.c.h.b16 %v357
        %v599 = vunpack.c.l.b16 %v358
        %v600 = vunpack.c.h.b16 %v358
        %v601 = vunpack.c.l.b16 %v359
        %v602 = vunpack.c.h.b16 %v359
        %v603 = vunpack.c.l.b16 %v360
        %v604 = vunpack.c.h.b16 %v360
        %v605 = vunpack.c.l.b16 %v361
        %v606 = vunpack.c.h.b16 %v361
        %v607 = vunpack.c.l.b16 %v362
        %v608 = vunpack.c.h.b16 %v362
        %v609 = vunpack.c.l.b16 %v363
        %v610 = vunpack.c.h.b16 %v363
        %v611 = vunpack.c.l.b16 %v364
        %v612 = vunpack.c.h.b16 %v364
        %v613 = vunpack.c.l.b16 %v365
        %v614 = vunpack.c.h.b16 %v365
        %v615 = vunpack.c.l.b16 %v366
        %v616 = vunpack.c.h.b16 %v366
        %v617 = vunpack.c.l.b16 %v367
        %v618 = vunpack.c.h.b16 %v367
        %v619 = vunpack.c.l.b16 %v368
        %v620 = vunpack.c.h.b16 %v368
        %v621 = vunpack.c.l.b16 %v369
        %v622 = vunpack.c.h.b16 %v369
        %v623 = vunpack.c.l.b16 %v370
        %v624 = vunpack.c.h.b16 %v370
        %v625 = vpack.c.b16 %v501, %v497
        %v626 = vpack.c.b16 %v502, %v498
        %v627 = vpack.c.b16 %v503, %v499
        %v628 = vpack.c.b16 %v504, %v500
        %v629 = vpack.c.b16 %v509, %v505
        %v630 = vpack.c.b16 %v510, %v506
        %v631 = vpack.c.b16 %v511, %v507
        %v632 = vpack.c.b16 %v512, %v508
        %v633 = vpack.c.b16 %v517, %v513
        %v634 = vpack.c.b16 %v518, %v514
        %v635 = vpack.c.b16 %v519, %v515
        %v636 = vpack.c.b16 %v520, %v516
        %v637 = vpack.c.b16 %v525, %v521
        %v638 = vpack.c.b16 %v526, %v522
        %v639 = vpack.c.b16 %v527, %v523
        %v640 = vpack.c.b16 %v528, %v524
        %v641 = vpack.c.b16 %v533, %v529
        %v642 = vpack.c.b16 %v534, %v530
        %v643 = vpack.c.b16 %v535, %v531
        %v644 = vpack.c.b16 %v536, %v532
        %v645 = vpack.c.b16 %v541, %v537
        %v646 = vpack.c.b16 %v542, %v538
        %v647 = vpack.c.b16 %v543, %v539
        %v648 = vpack.c.b16 %v544, %v540
        %v649 = vpack.c.b16 %v549, %v545
        %v650 = vpack.c.b16 %v550, %v546
        %v651 = vpack.c.b16 %v551, %v547
        %v652 = vpack.c.b16 %v552, %v548
        %v653 = vpack.c.b16 %v557, %v553
        %v654 = vpack.c.b16 %v558, %v554
        %v655 = vpack.c.b16 %v559, %v555
        %v656 = vpack.c.b16 %v560, %v556
        %v657 = vpack.c.b16 %v565, %v561
        %v658 = vpack.c.b16 %v566, %v562
        %v659 = vpack.c.b16 %v567, %v563
        %v660 = vpack.c.b16 %v568, %v564
        %v661 = vpack.c.b16 %v573, %v569
        %v662 = vpack.c.b16 %v574, %v570
        %v663 = vpack.c.b16 %v575, %v571
        %v664 = vpack.c.b16 %v576, %v572
        %v665 = vpack.c.b16 %v581, %v577
        %v666 = vpack.c.b16 %v582, %v578
        %v667 = vpack.c.b16 %v583, %v579
        %v668 = vpack.c.b16 %v584, %v580
        %v669 = vpack.c.b16 %v589, %v585
        %v670 = vpack.c.b16 %v590, %v586
        %v671 = vpack.c.b16 %v591, %v587
        %v672 = vpack.c.b16 %v592, %v588
        %v673 = vpack.c.b16 %v597, %v593
        %v674 = vpack.c.b16 %v598, %v594
        %v675 = vpack.c.b16 %v599, %v595
        %v676 = vpack.c.b16 %v600, %v596
        %v677 = vpack.c.b16 %v605, %v601
        %v678 = vpack.c.b16 %v606, %v602
        %v679 = vpack.c.b16 %v607, %v603
        %v680 = vpack.c.b16 %v608, %v604
        %v681 = vpack.c.b16 %v613, %v609
        %v682 = vpack.c.b16 %v614, %v610
        %v683 = vpack.c.b16 %v615, %v611
        %v684 = vpack.c.b16 %v616, %v612
        %v685 = vpack.c.b16 %v621, %v617
        %v686 = vpack.c.b16 %v622, %v618
        %v687 = vpack.c.b16 %v623, %v619
        %v688 = vpack.c.b16 %v624, %v620
        %753 = vmatprep.subr.bf16.mxu0 %v654
        %754 = vmatpush1.bf16.msra.mxu0 %v653
        %755 = vmatprep.subr.bf16.mxu0 %v650
        %756 = vmatpush1.bf16.msra.mxu0 %v649
        %757 = vmatprep.subr.bf16.mxu0 %v646
        %758 = vmatpush1.bf16.msra.mxu0 %v645
        %759 = vmatprep.subr.bf16.mxu0 %v642
        %760 = vmatpush1.bf16.msra.mxu0 %v641
        %761 = vmatprep.subr.bf16.mxu0 %v638
        %762 = vmatpush1.bf16.msra.mxu0 %v637
        %763 = vmatprep.subr.bf16.mxu0 %v634
        %764 = vmatpush1.bf16.msra.mxu0 %v633
        %765 = vmatprep.subr.bf16.mxu0 %v630
        %766 = vmatpush1.bf16.msra.mxu0 %v629
        %767 = vmatprep.subr.bf16.mxu0 %v626
        %768 = vmatpush1.bf16.msra.mxu0 %v625
        %769 = vmatprep.subr.bf16.mxu0 %v686
        %770 = vmatpush2.bf16.msra.mxu0 %v685
        %771 = vmatprep.subr.bf16.mxu0 %v682
        %772 = vmatpush2.bf16.msra.mxu0 %v681
        %773 = vmatprep.subr.bf16.mxu0 %v678
        %774 = vmatpush2.bf16.msra.mxu0 %v677
        %775 = vmatprep.subr.bf16.mxu0 %v674
        %776 = vmatpush2.bf16.msra.mxu0 %v673
        %777 = vmatprep.subr.bf16.mxu0 %v670
        %778 = vmatpush2.bf16.msra.mxu0 %v669
        %779 = vmatprep.subr.bf16.mxu0 %v666
        %780 = vmatpush2.bf16.msra.mxu0 %v665
        %781 = vmatprep.subr.bf16.mxu0 %v662
        %782 = vmatpush2.bf16.msra.mxu0 %v661
        %783 = vmatprep.subr.bf16.mxu0 %v658
        %784 = vmatpush2.bf16.msra.mxu0 %v657
        %785 = vmatprep.mubr.bf16.mxu0 %v418
        %786 = vmatmul.mubr.bf16.gmra.mxu0 %v417
        %v787 = vpop.f32.mrf.mxu0
        %v788 = vadd.f32 %v376, %v787
        %v789 = vpop.f32.mrf.mxu0
        %v790 = vadd.f32 %v380, %v789
        %v791 = vpop.f32.mrf.mxu0
        %v792 = vadd.f32 %v376, %v791
        %v793 = vpop.f32.mrf.mxu0
        %v794 = vadd.f32 %v380, %v793
        %795 = vmatprep.mubr.bf16.mxu0 %v420
        %796 = vmatmul.mubr.bf16.gmra.mxu0 %v419
        %v797 = vpop.f32.mrf.mxu0
        %v798 = vadd.f32 %v376, %v797
        %v799 = vpop.f32.mrf.mxu0
        %v800 = vadd.f32 %v380, %v799
        %v801 = vpop.f32.mrf.mxu0
        %v802 = vadd.f32 %v376, %v801
        %v803 = vpop.f32.mrf.mxu0
        %v804 = vadd.f32 %v380, %v803
        %805 = vmatprep.mubr.bf16.mxu0 %v422
        %806 = vmatmul.mubr.bf16.gmra.mxu0 %v421
        %v807 = vpop.f32.mrf.mxu0
        %v808 = vadd.f32 %v376, %v807
        %v809 = vpop.f32.mrf.mxu0
        %v810 = vadd.f32 %v380, %v809
        %v811 = vpop.f32.mrf.mxu0
        %v812 = vadd.f32 %v376, %v811
        %v813 = vpop.f32.mrf.mxu0
        %v814 = vadd.f32 %v380, %v813
        %815 = vmatprep.mubr.bf16.mxu0 %v424
        %816 = vmatmul.mubr.bf16.gmra.mxu0 %v423
        %v817 = vpop.f32.mrf.mxu0
        %v818 = vadd.f32 %v376, %v817
        %v819 = vpop.f32.mrf.mxu0
        %v820 = vadd.f32 %v380, %v819
        %v821 = vpop.f32.mrf.mxu0
        %v822 = vadd.f32 %v376, %v821
        %v823 = vpop.f32.mrf.mxu0
        %v824 = vadd.f32 %v380, %v823
        %825 = vdwg.mxu0
        %826 = vmatprep.subr.bf16.mxu0 %v656
        %827 = vmatpush1.bf16.msra.mxu0 %v655
        %828 = vmatprep.subr.bf16.mxu0 %v652
        %829 = vmatpush1.bf16.msra.mxu0 %v651
        %830 = vmatprep.subr.bf16.mxu0 %v648
        %831 = vmatpush1.bf16.msra.mxu0 %v647
        %832 = vmatprep.subr.bf16.mxu0 %v644
        %833 = vmatpush1.bf16.msra.mxu0 %v643
        %834 = vmatprep.subr.bf16.mxu0 %v640
        %835 = vmatpush1.bf16.msra.mxu0 %v639
        %836 = vmatprep.subr.bf16.mxu0 %v636
        %837 = vmatpush1.bf16.msra.mxu0 %v635
        %838 = vmatprep.subr.bf16.mxu0 %v632
        %839 = vmatpush1.bf16.msra.mxu0 %v631
        %840 = vmatprep.subr.bf16.mxu0 %v628
        %841 = vmatpush1.bf16.msra.mxu0 %v627
        %842 = vmatprep.subr.bf16.mxu0 %v688
        %843 = vmatpush2.bf16.msra.mxu0 %v687
        %844 = vmatprep.subr.bf16.mxu0 %v684
        %845 = vmatpush2.bf16.msra.mxu0 %v683
        %846 = vmatprep.subr.bf16.mxu0 %v680
        %847 = vmatpush2.bf16.msra.mxu0 %v679
        %848 = vmatprep.subr.bf16.mxu0 %v676
        %849 = vmatpush2.bf16.msra.mxu0 %v675
        %850 = vmatprep.subr.bf16.mxu0 %v672
        %851 = vmatpush2.bf16.msra.mxu0 %v671
        %852 = vmatprep.subr.bf16.mxu0 %v668
        %853 = vmatpush2.bf16.msra.mxu0 %v667
        %854 = vmatprep.subr.bf16.mxu0 %v664
        %855 = vmatpush2.bf16.msra.mxu0 %v663
        %856 = vmatprep.subr.bf16.mxu0 %v660
        %857 = vmatpush2.bf16.msra.mxu0 %v659
        %858 = vmatprep.mubr.bf16.mxu0 %v418
        %859 = vmatmul.mubr.bf16.gmra.mxu0 %v417
        %v860 = vpop.f32.mrf.mxu0
        %v861 = vadd.f32 %v384, %v860
        %v862 = vpop.f32.mrf.mxu0
        %v863 = vadd.f32 %v388, %v862
        %v864 = vpop.f32.mrf.mxu0
        %v865 = vadd.f32 %v384, %v864
        %v866 = vpop.f32.mrf.mxu0
        %v867 = vadd.f32 %v388, %v866
        %868 = vmatprep.mubr.bf16.mxu0 %v420
        %869 = vmatmul.mubr.bf16.gmra.mxu0 %v419
        %v870 = vpop.f32.mrf.mxu0
        %v871 = vadd.f32 %v384, %v870
        %v872 = vpop.f32.mrf.mxu0
        %v873 = vadd.f32 %v388, %v872
        %v874 = vpop.f32.mrf.mxu0
        %v875 = vadd.f32 %v384, %v874
        %v876 = vpop.f32.mrf.mxu0
        %v877 = vadd.f32 %v388, %v876
        %878 = vmatprep.mubr.bf16.mxu0 %v422
        %879 = vmatmul.mubr.bf16.gmra.mxu0 %v421
        %v880 = vpop.f32.mrf.mxu0
        %v881 = vadd.f32 %v384, %v880
        %v882 = vpop.f32.mrf.mxu0
        %v883 = vadd.f32 %v388, %v882
        %v884 = vpop.f32.mrf.mxu0
        %v885 = vadd.f32 %v384, %v884
        %v886 = vpop.f32.mrf.mxu0
        %v887 = vadd.f32 %v388, %v886
        %888 = vmatprep.mubr.bf16.mxu0 %v424
        %889 = vmatmul.mubr.bf16.gmra.mxu0 %v423
        %v890 = vpop.f32.mrf.mxu0
        %v891 = vadd.f32 %v384, %v890
        %v892 = vpop.f32.mrf.mxu0
        %v893 = vadd.f32 %v388, %v892
        %v894 = vpop.f32.mrf.mxu0
        %v895 = vadd.f32 %v384, %v894
        %v896 = vpop.f32.mrf.mxu0
        %v897 = vadd.f32 %v388, %v896
        %898 = vdwg.mxu0
        %v899 = vmax.f32 %v788, 0.0
        %v900 = vmax.f32 %v790, 0.0
        %v901 = vmax.f32 %v792, 0.0
        %v902 = vmax.f32 %v794, 0.0
        %v903 = vmax.f32 %v798, 0.0
        %v904 = vmax.f32 %v800, 0.0
        %v905 = vmax.f32 %v802, 0.0
        %v906 = vmax.f32 %v804, 0.0
        %v907 = vmax.f32 %v808, 0.0
        %v908 = vmax.f32 %v810, 0.0
        %v909 = vmax.f32 %v812, 0.0
        %v910 = vmax.f32 %v814, 0.0
        %v911 = vmax.f32 %v818, 0.0
        %v912 = vmax.f32 %v820, 0.0
        %v913 = vmax.f32 %v822, 0.0
        %v914 = vmax.f32 %v824, 0.0
        %v915 = vpack.c.bf16 %v901, %v899
        %v916 = vpack.c.bf16 %v902, %v900
        %v917 = vpack.c.bf16 %v905, %v903
        %v918 = vpack.c.bf16 %v906, %v904
        %v919 = vpack.c.bf16 %v909, %v907
        %v920 = vpack.c.bf16 %v910, %v908
        %v921 = vpack.c.bf16 %v913, %v911
        %v922 = vpack.c.bf16 %v914, %v912
        %v923 = vld [vmem:[%s3] sm:$0xff]
        %v924 = vld [vmem:[%s3 + $0x8] sm:$0xff]
        %v925 = vld [vmem:[%s3 + $0x10] sm:$0xff]
        %v926 = vld [vmem:[%s3 + $0x18] sm:$0xff]
        %v927 = vld [vmem:[%s3 + $0x20] sm:$0xff]
        %v928 = vld [vmem:[%s3 + $0x28] sm:$0xff]
        %v929 = vld [vmem:[%s3 + $0x30] sm:$0xff]
        %v930 = vld [vmem:[%s3 + $0x38] sm:$0xff]
        %v931 = vld [vmem:[%s3 + $0x40] sm:$0xff]
        %v932 = vld [vmem:[%s3 + $0x48] sm:$0xff]
        %v933 = vld [vmem:[%s3 + $0x50] sm:$0xff]
        %v934 = vld [vmem:[%s3 + $0x58] sm:$0xff]
        %v935 = vld [vmem:[%s3 + $0x60] sm:$0xff]
        %v936 = vld [vmem:[%s3 + $0x68] sm:$0xff]
        %v937 = vld [vmem:[%s3 + $0x70] sm:$0xff]
        %v938 = vld [vmem:[%s3 + $0x78] sm:$0xff]
        %v939 = vld [vmem:[%s3 + $0x80] sm:$0xff]
        %v940 = vld [vmem:[%s3 + $0x88] sm:$0xff]
        %v941 = vld [vmem:[%s3 + $0x90] sm:$0xff]
        %v942 = vld [vmem:[%s3 + $0x98] sm:$0xff]
        %v943 = vld [vmem:[%s3 + $0xa0] sm:$0xff]
        %v944 = vld [vmem:[%s3 + $0xa8] sm:$0xff]
        %v945 = vld [vmem:[%s3 + $0xb0] sm:$0xff]
        %v946 = vld [vmem:[%s3 + $0xb8] sm:$0xff]
        %v947 = vld [vmem:[%s3 + $0xc0] sm:$0xff]
        %v948 = vld [vmem:[%s3 + $0xc8] sm:$0xff]
        %v949 = vld [vmem:[%s3 + $0xd0] sm:$0xff]
        %v950 = vld [vmem:[%s3 + $0xd8] sm:$0xff]
        %v951 = vld [vmem:[%s3 + $0xe0] sm:$0xff]
        %v952 = vld [vmem:[%s3 + $0xe8] sm:$0xff]
        %v953 = vld [vmem:[%s3 + $0xf0] sm:$0xff]
        %v954 = vld [vmem:[%s3 + $0xf8] sm:$0xff]
        %v955 = vld [vmem:[%s4] sm:$0x3]
        %v957 = vlaneseq
        %v958 = vshrl.u32 %v957, 7
        %v959 = vsub.s32 0, %v958
        %v960 = vrot.slane %v955, %v959
        %v961 = vlaneseq
        %v962 = vshrl.u32 %v961, 7
        %v963 = vsub.s32 1, %v962
        %v964 = vrot.slane %v955, %v963
        %v999 = vunpack.c.l.b16 %v923
        %v1000 = vunpack.c.h.b16 %v923
        %v1001 = vunpack.c.l.b16 %v924
        %v1002 = vunpack.c.h.b16 %v924
        %v1003 = vunpack.c.l.b16 %v925
        %v1004 = vunpack.c.h.b16 %v925
        %v1005 = vunpack.c.l.b16 %v926
        %v1006 = vunpack.c.h.b16 %v926
        %v1007 = vunpack.c.l.b16 %v927
        %v1008 = vunpack.c.h.b16 %v927
        %v1009 = vunpack.c.l.b16 %v928
        %v1010 = vunpack.c.h.b16 %v928
        %v1011 = vunpack.c.l.b16 %v929
        %v1012 = vunpack.c.h.b16 %v929
        %v1013 = vunpack.c.l.b16 %v930
        %v1014 = vunpack.c.h.b16 %v930
        %v1015 = vunpack.c.l.b16 %v931
        %v1016 = vunpack.c.h.b16 %v931
        %v1017 = vunpack.c.l.b16 %v932
        %v1018 = vunpack.c.h.b16 %v932
        %v1019 = vunpack.c.l.b16 %v933
        %v1020 = vunpack.c.h.b16 %v933
        %v1021 = vunpack.c.l.b16 %v934
        %v1022 = vunpack.c.h.b16 %v934
        %v1023 = vunpack.c.l.b16 %v935
        %v1024 = vunpack.c.h.b16 %v935
        %v1025 = vunpack.c.l.b16 %v936
        %v1026 = vunpack.c.h.b16 %v936
        %v1027 = vunpack.c.l.b16 %v937
        %v1028 = vunpack.c.h.b16 %v937
        %v1029 = vunpack.c.l.b16 %v938
        %v1030 = vunpack.c.h.b16 %v938
        %v1031 = vunpack.c.l.b16 %v939
        %v1032 = vunpack.c.h.b16 %v939
        %v1033 = vunpack.c.l.b16 %v940
        %v1034 = vunpack.c.h.b16 %v940
        %v1035 = vunpack.c.l.b16 %v941
        %v1036 = vunpack.c.h.b16 %v941
        %v1037 = vunpack.c.l.b16 %v942
        %v1038 = vunpack.c.h.b16 %v942
        %v1039 = vunpack.c.l.b16 %v943
        %v1040 = vunpack.c.h.b16 %v943
        %v1041 = vunpack.c.l.b16 %v944
        %v1042 = vunpack.c.h.b16 %v944
        %v1043 = vunpack.c.l.b16 %v945
        %v1044 = vunpack.c.h.b16 %v945
        %v1045 = vunpack.c.l.b16 %v946
        %v1046 = vunpack.c.h.b16 %v946
        %v1047 = vunpack.c.l.b16 %v947
        %v1048 = vunpack.c.h.b16 %v947
        %v1049 = vunpack.c.l.b16 %v948
        %v1050 = vunpack.c.h.b16 %v948
        %v1051 = vunpack.c.l.b16 %v949
        %v1052 = vunpack.c.h.b16 %v949
        %v1053 = vunpack.c.l.b16 %v950
        %v1054 = vunpack.c.h.b16 %v950
        %v1055 = vunpack.c.l.b16 %v951
        %v1056 = vunpack.c.h.b16 %v951
        %v1057 = vunpack.c.l.b16 %v952
        %v1058 = vunpack.c.h.b16 %v952
        %v1059 = vunpack.c.l.b16 %v953
        %v1060 = vunpack.c.h.b16 %v953
        %v1061 = vunpack.c.l.b16 %v954
        %v1062 = vunpack.c.h.b16 %v954
        %v1063 = vpack.c.b16 %v1001, %v999
        %v1064 = vpack.c.b16 %v1002, %v1000
        %v1065 = vpack.c.b16 %v1005, %v1003
        %v1066 = vpack.c.b16 %v1006, %v1004
        %v1067 = vpack.c.b16 %v1009, %v1007
        %v1068 = vpack.c.b16 %v1010, %v1008
        %v1069 = vpack.c.b16 %v1013, %v1011
        %v1070 = vpack.c.b16 %v1014, %v1012
        %v1071 = vpack.c.b16 %v1017, %v1015
        %v1072 = vpack.c.b16 %v1018, %v1016
        %v1073 = vpack.c.b16 %v1021, %v1019
        %v1074 = vpack.c.b16 %v1022, %v1020
        %v1075 = vpack.c.b16 %v1025, %v1023
        %v1076 = vpack.c.b16 %v1026, %v1024
        %v1077 = vpack.c.b16 %v1029, %v1027
        %v1078 = vpack.c.b16 %v1030, %v1028
        %v1079 = vpack.c.b16 %v1033, %v1031
        %v1080 = vpack.c.b16 %v1034, %v1032
        %v1081 = vpack.c.b16 %v1037, %v1035
        %v1082 = vpack.c.b16 %v1038, %v1036
        %v1083 = vpack.c.b16 %v1041, %v1039
        %v1084 = vpack.c.b16 %v1042, %v1040
        %v1085 = vpack.c.b16 %v1045, %v1043
        %v1086 = vpack.c.b16 %v1046, %v1044
        %v1087 = vpack.c.b16 %v1049, %v1047
        %v1088 = vpack.c.b16 %v1050, %v1048
        %v1089 = vpack.c.b16 %v1053, %v1051
        %v1090 = vpack.c.b16 %v1054, %v1052
        %v1091 = vpack.c.b16 %v1057, %v1055
        %v1092 = vpack.c.b16 %v1058, %v1056
        %v1093 = vpack.c.b16 %v1061, %v1059
        %v1094 = vpack.c.b16 %v1062, %v1060
        %1127 = vmatprep.subr.bf16.mxu0 %v1078
        %1128 = vmatpush1.bf16.msra.mxu0 %v1077
        %1129 = vmatprep.subr.bf16.mxu0 %v1076
        %1130 = vmatpush1.bf16.msra.mxu0 %v1075
        %1131 = vmatprep.subr.bf16.mxu0 %v1074
        %1132 = vmatpush1.bf16.msra.mxu0 %v1073
        %1133 = vmatprep.subr.bf16.mxu0 %v1072
        %1134 = vmatpush1.bf16.msra.mxu0 %v1071
        %1135 = vmatprep.subr.bf16.mxu0 %v1070
        %1136 = vmatpush1.bf16.msra.mxu0 %v1069
        %1137 = vmatprep.subr.bf16.mxu0 %v1068
        %1138 = vmatpush1.bf16.msra.mxu0 %v1067
        %1139 = vmatprep.subr.bf16.mxu0 %v1066
        %1140 = vmatpush1.bf16.msra.mxu0 %v1065
        %1141 = vmatprep.subr.bf16.mxu0 %v1064
        %1142 = vmatpush1.bf16.msra.mxu0 %v1063
        %1143 = vmatprep.subr.bf16.mxu0 %v1094
        %1144 = vmatpush2.bf16.msra.mxu0 %v1093
        %1145 = vmatprep.subr.bf16.mxu0 %v1092
        %1146 = vmatpush2.bf16.msra.mxu0 %v1091
        %1147 = vmatprep.subr.bf16.mxu0 %v1090
        %1148 = vmatpush2.bf16.msra.mxu0 %v1089
        %1149 = vmatprep.subr.bf16.mxu0 %v1088
        %1150 = vmatpush2.bf16.msra.mxu0 %v1087
        %1151 = vmatprep.subr.bf16.mxu0 %v1086
        %1152 = vmatpush2.bf16.msra.mxu0 %v1085
        %1153 = vmatprep.subr.bf16.mxu0 %v1084
        %1154 = vmatpush2.bf16.msra.mxu0 %v1083
        %1155 = vmatprep.subr.bf16.mxu0 %v1082
        %1156 = vmatpush2.bf16.msra.mxu0 %v1081
        %1157 = vmatprep.subr.bf16.mxu0 %v1080
        %1158 = vmatpush2.bf16.msra.mxu0 %v1079
        %1159 = vmatprep.mubr.bf16.mxu0 %v916
        %1160 = vmatmul.mubr.bf16.gmra.mxu0 %v915
        %v1161 = vpop.f32.mrf.mxu0
        %v1162 = vadd.f32 %v960, %v1161
        %v1163 = vpop.f32.mrf.mxu0
        %v1164 = vadd.f32 %v964, %v1163
        %v1165 = vpop.f32.mrf.mxu0
        %v1166 = vadd.f32 %v960, %v1165
        %v1167 = vpop.f32.mrf.mxu0
        %v1168 = vadd.f32 %v964, %v1167
        %1169 = vmatprep.mubr.bf16.mxu0 %v918
        %1170 = vmatmul.mubr.bf16.gmra.mxu0 %v917
        %v1171 = vpop.f32.mrf.mxu0
        %v1172 = vadd.f32 %v960, %v1171
        %v1173 = vpop.f32.mrf.mxu0
        %v1174 = vadd.f32 %v964, %v1173
        %v1175 = vpop.f32.mrf.mxu0
        %v1176 = vadd.f32 %v960, %v1175
        %v1177 = vpop.f32.mrf.mxu0
        %v1178 = vadd.f32 %v964, %v1177
        %1179 = vmatprep.mubr.bf16.mxu0 %v920
        %1180 = vmatmul.mubr.bf16.gmra.mxu0 %v919
        %v1181 = vpop.f32.mrf.mxu0
        %v1182 = vadd.f32 %v960, %v1181
        %v1183 = vpop.f32.mrf.mxu0
        %v1184 = vadd.f32 %v964, %v1183
        %v1185 = vpop.f32.mrf.mxu0
        %v1186 = vadd.f32 %v960, %v1185
        %v1187 = vpop.f32.mrf.mxu0
        %v1188 = vadd.f32 %v964, %v1187
        %1189 = vmatprep.mubr.bf16.mxu0 %v922
        %1190 = vmatmul.mubr.bf16.gmra.mxu0 %v921
        %v1191 = vpop.f32.mrf.mxu0
        %v1192 = vadd.f32 %v960, %v1191
        %v1193 = vpop.f32.mrf.mxu0
        %v1194 = vadd.f32 %v964, %v1193
        %v1195 = vpop.f32.mrf.mxu0
        %v1196 = vadd.f32 %v960, %v1195
        %v1197 = vpop.f32.mrf.mxu0
        %v1198 = vadd.f32 %v964, %v1197
        %1199 = vdwg.mxu0
        %v1200 = vmax.f32 %v1162, 0.0
        %v1201 = vmax.f32 %v1164, 0.0
        %v1202 = vmax.f32 %v1166, 0.0
        %v1203 = vmax.f32 %v1168, 0.0
        %v1204 = vmax.f32 %v1172, 0.0
        %v1205 = vmax.f32 %v1174, 0.0
        %v1206 = vmax.f32 %v1176, 0.0
        %v1207 = vmax.f32 %v1178, 0.0
        %v1208 = vmax.f32 %v1182, 0.0
        %v1209 = vmax.f32 %v1184, 0.0
        %v1210 = vmax.f32 %v1186, 0.0
        %v1211 = vmax.f32 %v1188, 0.0
        %v1212 = vmax.f32 %v1192, 0.0
        %v1213 = vmax.f32 %v1194, 0.0
        %v1214 = vmax.f32 %v1196, 0.0
        %v1215 = vmax.f32 %v1198, 0.0
        %v1216 = vsub.f32 0.0, %v861
        %v1217 = vsub.f32 0.0, %v863
        %v1218 = vsub.f32 0.0, %v865
        %v1219 = vsub.f32 0.0, %v867
        %v1220 = vsub.f32 0.0, %v871
        %v1221 = vsub.f32 0.0, %v873
        %v1222 = vsub.f32 0.0, %v875
        %v1223 = vsub.f32 0.0, %v877
        %v1224 = vsub.f32 0.0, %v881
        %v1225 = vsub.f32 0.0, %v883
        %v1226 = vsub.f32 0.0, %v885
        %v1227 = vsub.f32 0.0, %v887
        %v1228 = vsub.f32 0.0, %v891
        %v1229 = vsub.f32 0.0, %v893
        %v1230 = vsub.f32 0.0, %v895
        %v1231 = vsub.f32 0.0, %v897
        %v1232 = vmul.f32 %v1216, 1.442695
        %v1233 = vpow.pop %v1232
        %v1234 = vmul.f32 %v1217, 1.442695
        %v1235 = vpow.pop %v1234
        %v1236 = vmul.f32 %v1218, 1.442695
        %v1237 = vpow.pop %v1236
        %v1238 = vmul.f32 %v1219, 1.442695
        %v1239 = vpow.pop %v1238
        %v1240 = vmul.f32 %v1220, 1.442695
        %v1241 = vpow.pop %v1240
        %v1242 = vmul.f32 %v1221, 1.442695
        %v1243 = vpow.pop %v1242
        %v1244 = vmul.f32 %v1222, 1.442695
        %v1245 = vpow.pop %v1244
        %v1246 = vmul.f32 %v1223, 1.442695
        %v1247 = vpow.pop %v1246
        %v1248 = vmul.f32 %v1224, 1.442695
        %v1249 = vpow.pop %v1248
        %v1250 = vmul.f32 %v1225, 1.442695
        %v1251 = vpow.pop %v1250
        %v1252 = vmul.f32 %v1226, 1.442695
        %v1253 = vpow.pop %v1252
        %v1254 = vmul.f32 %v1227, 1.442695
        %v1255 = vpow.pop %v1254
        %v1256 = vmul.f32 %v1228, 1.442695
        %v1257 = vpow.pop %v1256
        %v1258 = vmul.f32 %v1229, 1.442695
        %v1259 = vpow.pop %v1258
        %v1260 = vmul.f32 %v1230, 1.442695
        %v1261 = vpow.pop %v1260
        %v1262 = vmul.f32 %v1231, 1.442695
        %v1263 = vpow.pop %v1262
        %v1264 = vadd.f32 %v1233, 1.0
        %v1265 = vadd.f32 %v1235, 1.0
        %v1266 = vadd.f32 %v1237, 1.0
        %v1267 = vadd.f32 %v1239, 1.0
        %v1268 = vadd.f32 %v1241, 1.0
        %v1269 = vadd.f32 %v1243, 1.0
        %v1270 = vadd.f32 %v1245, 1.0
        %v1271 = vadd.f32 %v1247, 1.0
        %v1272 = vadd.f32 %v1249, 1.0
        %v1273 = vadd.f32 %v1251, 1.0
        %v1274 = vadd.f32 %v1253, 1.0
        %v1275 = vadd.f32 %v1255, 1.0
        %v1276 = vadd.f32 %v1257, 1.0
        %v1277 = vadd.f32 %v1259, 1.0
        %v1278 = vadd.f32 %v1261, 1.0
        %v1279 = vadd.f32 %v1263, 1.0
        %v1280 = vrcp.pop %v1264
        %v1281 = vrcp.pop %v1265
        %v1282 = vrcp.pop %v1266
        %v1283 = vrcp.pop %v1267
        %v1284 = vrcp.pop %v1268
        %v1285 = vrcp.pop %v1269
        %v1286 = vrcp.pop %v1270
        %v1287 = vrcp.pop %v1271
        %v1288 = vrcp.pop %v1272
        %v1289 = vrcp.pop %v1273
        %v1290 = vrcp.pop %v1274
        %v1291 = vrcp.pop %v1275
        %v1292 = vrcp.pop %v1276
        %v1293 = vrcp.pop %v1277
        %v1294 = vrcp.pop %v1278
        %v1295 = vrcp.pop %v1279
        %v1296 = vunpack.c.l.bf16 %v271
        %v1297 = vunpack.c.h.bf16 %v271
        %v1298 = vunpack.c.l.bf16 %v272
        %v1299 = vunpack.c.h.bf16 %v272
        %v1300 = vunpack.c.l.bf16 %v273
        %v1301 = vunpack.c.h.bf16 %v273
        %v1302 = vunpack.c.l.bf16 %v274
        %v1303 = vunpack.c.h.bf16 %v274
        %v1304 = vunpack.c.l.bf16 %v275
        %v1305 = vunpack.c.h.bf16 %v275
        %v1306 = vunpack.c.l.bf16 %v276
        %v1307 = vunpack.c.h.bf16 %v276
        %v1308 = vunpack.c.l.bf16 %v277
        %v1309 = vunpack.c.h.bf16 %v277
        %v1310 = vunpack.c.l.bf16 %v278
        %v1311 = vunpack.c.h.bf16 %v278
        %v1312 = vsub.f32 %v1200, %v1296
        %v1313 = vsub.f32 %v1201, %v1297
        %v1314 = vsub.f32 %v1202, %v1298
        %v1315 = vsub.f32 %v1203, %v1299
        %v1316 = vsub.f32 %v1204, %v1300
        %v1317 = vsub.f32 %v1205, %v1301
        %v1318 = vsub.f32 %v1206, %v1302
        %v1319 = vsub.f32 %v1207, %v1303
        %v1320 = vsub.f32 %v1208, %v1304
        %v1321 = vsub.f32 %v1209, %v1305
        %v1322 = vsub.f32 %v1210, %v1306
        %v1323 = vsub.f32 %v1211, %v1307
        %v1324 = vsub.f32 %v1212, %v1308
        %v1325 = vsub.f32 %v1213, %v1309
        %v1326 = vsub.f32 %v1214, %v1310
        %v1327 = vsub.f32 %v1215, %v1311
        %v1328 = vmul.f32 %v1280, %v1312
        %v1329 = vmul.f32 %v1281, %v1313
        %v1330 = vmul.f32 %v1282, %v1314
        %v1331 = vmul.f32 %v1283, %v1315
        %v1332 = vmul.f32 %v1284, %v1316
        %v1333 = vmul.f32 %v1285, %v1317
        %v1334 = vmul.f32 %v1286, %v1318
        %v1335 = vmul.f32 %v1287, %v1319
        %v1336 = vmul.f32 %v1288, %v1320
        %v1337 = vmul.f32 %v1289, %v1321
        %v1338 = vmul.f32 %v1290, %v1322
        %v1339 = vmul.f32 %v1291, %v1323
        %v1340 = vmul.f32 %v1292, %v1324
        %v1341 = vmul.f32 %v1293, %v1325
        %v1342 = vmul.f32 %v1294, %v1326
        %v1343 = vmul.f32 %v1295, %v1327
        %v1344 = vadd.f32 %v1296, %v1328
        %v1345 = vadd.f32 %v1297, %v1329
        %v1346 = vadd.f32 %v1298, %v1330
        %v1347 = vadd.f32 %v1299, %v1331
        %v1348 = vadd.f32 %v1300, %v1332
        %v1349 = vadd.f32 %v1301, %v1333
        %v1350 = vadd.f32 %v1302, %v1334
        %v1351 = vadd.f32 %v1303, %v1335
        %v1352 = vadd.f32 %v1304, %v1336
        %v1353 = vadd.f32 %v1305, %v1337
        %v1354 = vadd.f32 %v1306, %v1338
        %v1355 = vadd.f32 %v1307, %v1339
        %v1356 = vadd.f32 %v1308, %v1340
        %v1357 = vadd.f32 %v1309, %v1341
        %v1358 = vadd.f32 %v1310, %v1342
        %v1359 = vadd.f32 %v1311, %v1343
        %1360 = vst [vmem:[%s246] sm:$0xff] %v1344
        %vm1361 = vcmask 588800
        %1362 = vst.msk [vmem:[%s246 + $0x8] sm:$0xff] %vm1361, %v1345
        %1363 = vst [vmem:[%s246 + $0x10] sm:$0xff] %v1346
        %1364 = vst.msk [vmem:[%s246 + $0x18] sm:$0xff] %vm1361, %v1347
        %1365 = vst [vmem:[%s246 + $0x20] sm:$0xff] %v1348
        %1366 = vst.msk [vmem:[%s246 + $0x28] sm:$0xff] %vm1361, %v1349
        %1367 = vst [vmem:[%s246 + $0x30] sm:$0xff] %v1350
        %1368 = vst.msk [vmem:[%s246 + $0x38] sm:$0xff] %vm1361, %v1351
        %1369 = vst [vmem:[%s246 + $0x40] sm:$0xff] %v1352
        %1370 = vst.msk [vmem:[%s246 + $0x48] sm:$0xff] %vm1361, %v1353
        %1371 = vst [vmem:[%s246 + $0x50] sm:$0xff] %v1354
        %1372 = vst.msk [vmem:[%s246 + $0x58] sm:$0xff] %vm1361, %v1355
        %1373 = vst [vmem:[%s246 + $0x60] sm:$0xff] %v1356
        %1374 = vst.msk [vmem:[%s246 + $0x68] sm:$0xff] %vm1361, %v1357
        %1375 = vst [vmem:[%s246 + $0x70] sm:$0xff] %v1358
        %1376 = vst.msk [vmem:[%s246 + $0x78] sm:$0xff] %vm1361, %v1359
        %s1377 = sand.u32 %s135, 1
        %s1378 = sand.u32 %s135, 1
        %s1379 = smul.addr %s1378, 128
        %s1380 = scalar_lea.vmem [#allocation5], %s1379
        // Predicated region
        $region45: #{_lambda_.1} parent=39 // pred_check
          %p1381 = pneg %p145
        $region46: #{_lambda_.1} parent=39 // pred_check_branch
          %1383 = sbr.rel (%p1381) target = $region48
        $region47: #{_lambda_.1} parent=39 // pred_region
          %s1384 = smul.u32 8, %s17
          %s1385 = ssub.s32 15, %s1384
          %p1386 = scmp.lt.s32.totalorder %s1385, 8
          %s1387 = scalar_select %p1386, %s1385, 8
          %s1388 = smul.u32 128, %s1387
          %s1389 = smul.u32 %s1388, 2
          %p1390 = scmp.ne.s32.totalorder 0, %s1389
          %s1391 = smul.addr %s1384, 2
          %s1392 = smul.addr %s1391, 8
          %s1393 = scalar_lea.vmem %s5, %s1392
          // Predicated region
          $region49: #{_lambda_.1} parent=47 // pred_check
            %p1394 = pneg %p1390
          $region50: #{_lambda_.1} parent=47 // pred_check_branch
            %1396 = sbr.rel (%p1394) target = $region52
          $region51: #{_lambda_.1} parent=47 // pred_region
            // Predicated region
            $region53: #{_lambda_.1} parent=51 // pred_check
              _
            $region54: #{_lambda_.1} parent=51 // pred_check_branch
              %1398 = sbr.rel (0) target = $region56
            $region55: #{_lambda_.1} parent=51 // pred_region
              %s1399 = sshrl.u32 %s1387, 3
              // While loop
              $region57: #{_lambda_.1} parent=55 // loop_pre_header
                _
              $region58: #{_lambda_.1} parent=55 // loop_header
                %s1401 = sphi 0, %s1403
                %p1402 = scmp.ge.s32.totalorder %s1401, %s1399
                %s1406 = sphi 0, %s1443
                %s1407 = sphi %s1380, %s1446
                %s1408 = sphi %s1393, %s1447
              $region59: #{_lambda_.1} parent=55 // loop_header_branch
                %1405 = sbr.rel (%p1402) target = $region63
              $region60: #{_lambda_.1} parent=55 // loop_body
                %v1409 = vld [vmem:[%s1407] sm:$0xff]
                %1410 = vst [vmem:[%s1408] sm:$0xff] %v1409
                %v1411 = vld [vmem:[%s1407 + $0x10] sm:$0xff]
                %1412 = vst [vmem:[%s1408 + $0x10] sm:$0xff] %v1411
                %v1413 = vld [vmem:[%s1407 + $0x20] sm:$0xff]
                %1414 = vst [vmem:[%s1408 + $0x20] sm:$0xff] %v1413
                %v1415 = vld [vmem:[%s1407 + $0x30] sm:$0xff]
                %1416 = vst [vmem:[%s1408 + $0x30] sm:$0xff] %v1415
                %v1417 = vld [vmem:[%s1407 + $0x40] sm:$0xff]
                %1418 = vst [vmem:[%s1408 + $0x40] sm:$0xff] %v1417
                %v1419 = vld [vmem:[%s1407 + $0x50] sm:$0xff]
                %1420 = vst [vmem:[%s1408 + $0x50] sm:$0xff] %v1419
                %v1421 = vld [vmem:[%s1407 + $0x60] sm:$0xff]
                %1422 = vst [vmem:[%s1408 + $0x60] sm:$0xff] %v1421
                %v1423 = vld [vmem:[%s1407 + $0x70] sm:$0xff]
                %1424 = vst [vmem:[%s1408 + $0x70] sm:$0xff] %v1423
                %v1425 = vld [vmem:[%s1407 + $0x8] sm:$0xff]
                %1426 = vst [vmem:[%s1408 + $0x8] sm:$0xff] %v1425
                %v1427 = vld [vmem:[%s1407 + $0x18] sm:$0xff]
                %1428 = vst [vmem:[%s1408 + $0x18] sm:$0xff] %v1427
                %v1429 = vld [vmem:[%s1407 + $0x28] sm:$0xff]
                %1430 = vst [vmem:[%s1408 + $0x28] sm:$0xff] %v1429
                %v1431 = vld [vmem:[%s1407 + $0x38] sm:$0xff]
                %1432 = vst [vmem:[%s1408 + $0x38] sm:$0xff] %v1431
                %v1433 = vld [vmem:[%s1407 + $0x48] sm:$0xff]
                %1434 = vst [vmem:[%s1408 + $0x48] sm:$0xff] %v1433
                %v1435 = vld [vmem:[%s1407 + $0x58] sm:$0xff]
                %1436 = vst [vmem:[%s1408 + $0x58] sm:$0xff] %v1435
                %v1437 = vld [vmem:[%s1407 + $0x68] sm:$0xff]
                %1438 = vst [vmem:[%s1408 + $0x68] sm:$0xff] %v1437
                %v1439 = vld [vmem:[%s1407 + $0x78] sm:$0xff]
                %1440 = vst [vmem:[%s1408 + $0x78] sm:$0xff] %v1439
                %s1441 = sadd.s32 1, %s1406
                %p1442 = scmp.ge.s32.totalorder %s1441, %s1399
                %s1443 = scalar_select %p1442, 0, %s1441
                %s1444 = smul.u32 %s1443, 128
                %s1445 = smul.u32 %s1443, 128
                %s1446 = scalar_lea.vmem %s1380, %s1444 [#allocation5]
                %s1447 = scalar_lea.vmem %s1393, %s1445
              $region61: #{_lambda_.1} parent=55 // loop_footer
                %s1403 = sadd.s32 %s1401, 1
              $region62: #{_lambda_.1} parent=55 // loop_footer_branch
                %1400 = sbr.rel target = $region58
              $region63: #{_lambda_.1} parent=55 // loop_exit
                _
              %s1448 = sshrl.u32 %s1387, 3
              %s1449 = sand.u32 %s1387, 7
              %s1450 = smul.u32 %s1448, 8
              %s1451 = smul.u32 16, %s1450
              %s1452 = scalar_lea.vmem %s1380, %s1451 [#allocation5]
              %s1453 = smul.u32 16, %s1450
              %s1454 = scalar_lea.vmem %s1393, %s1453
              // While loop
              $region64: #{_lambda_.1} parent=55 // loop_pre_header
                _
              $region65: #{_lambda_.1} parent=55 // loop_header
                %s1456 = sphi 0, %s1458
                %p1457 = scmp.ge.s32.totalorder %s1456, %s1449
                %s1461 = sphi 0, %s1470
                %s1462 = sphi %s1452, %s1473
                %s1463 = sphi %s1454, %s1474
              $region66: #{_lambda_.1} parent=55 // loop_header_branch
                %1460 = sbr.rel (%p1457) target = $region70
              $region67: #{_lambda_.1} parent=55 // loop_body
                %v1464 = vld [vmem:[%s1462] sm:$0xff]
                %1465 = vst [vmem:[%s1463] sm:$0xff] %v1464
                %v1466 = vld [vmem:[%s1462 + $0x8] sm:$0xff]
                %1467 = vst [vmem:[%s1463 + $0x8] sm:$0xff] %v1466
                %s1468 = sadd.s32 1, %s1461
                %p1469 = scmp.ge.s32.totalorder %s1468, %s1449
                %s1470 = scalar_select %p1469, 0, %s1468
                %s1471 = smul.u32 %s1470, 16
                %s1472 = smul.u32 %s1470, 16
                %s1473 = scalar_lea.vmem %s1452, %s1471 [#allocation5]
                %s1474 = scalar_lea.vmem %s1454, %s1472
              $region68: #{_lambda_.1} parent=55 // loop_footer
                %s1458 = sadd.s32 %s1456, 1
              $region69: #{_lambda_.1} parent=55 // loop_footer_branch
                %1455 = sbr.rel target = $region65
              $region70: #{_lambda_.1} parent=55 // loop_exit
                _
            $region56: #{_lambda_.1} parent=51 // pred_fallthru
              _
            // Predicated region
            $region71: #{_lambda_.1} parent=51 // pred_check
              _
            $region72: #{_lambda_.1} parent=51 // pred_check_branch
              %1476 = sbr.rel target = $region74
            $region73: #{_lambda_.1} parent=51 // pred_region
              _
            $region74: #{_lambda_.1} parent=51 // pred_fallthru
              _
          $region52: #{_lambda_.1} parent=47 // pred_fallthru
            _
          %1477 = vnop
        $region48: #{_lambda_.1} parent=39 // pred_fallthru
          _
      $region40: #{_lambda_.1} parent=5 // pred_fallthru
        _
      %p1478 = scmp.le.s32.totalorder 2, %s12
      // Predicated region
      $region75: #{_lambda_.1} parent=5 // pred_check
        %p1479 = pneg %p1478
      $region76: #{_lambda_.1} parent=5 // pred_check_branch
        %1481 = sbr.rel (%p1479) target = $region78
      $region77: #{_lambda_.1} parent=5 // pred_region
        %s1482 = ssub.s32 %s12, 2
        // Predicated region
        $region79: #{_lambda_.1} parent=77 // pred_check
          %p1483 = pneg %p151
        $region80: #{_lambda_.1} parent=77 // pred_check_branch
          %1485 = sbr.rel (%p1483) target = $region82
        $region81: #{_lambda_.1} parent=77 // pred_region
          %s1486 = sand.u32 %s136, 1
          %s1487 = sand.u32 %s136, 1
          %s1488 = smul.addr %s1487, 128
          %s1489 = scalar_lea.vmem [#allocation5], %s1488
        $region82: #{_lambda_.1} parent=77 // pred_fallthru
          _
      $region78: #{_lambda_.1} parent=5 // pred_fallthru
        _
    $region6: #{_lambda_.1} parent=1 // loop_footer
      %s16 = sadd.s32 1, %s12
    $region7: #{_lambda_.1} parent=1 // loop_footer_branch
      %11 = sbr.rel target = $region3
    $region8: #{_lambda_.1} parent=1 // loop_exit
      _
    %1490 = vsyncpa [#allocation4], 1
    %s1491 = scalar_lea.sflag [#allocation4], 1
    %1492 = vsyncpa %s1491, 1

</llo_original>
